<compile_context>
chip_gen: v6e
topology: v6e:2x2x1
jax: 0.10.0
libtpu: 0.0.40
codegen_flags: <defaults>
</compile_context>

<pallas_src>
import functools
import math

import jax
import jax.numpy as jnp
import numpy as np
from jax.experimental import pallas as pl
from jax.experimental.pallas import tpu as pltpu


def _linear_kernel(x_ref, w_ref, b_ref, o_ref, acc_ref):
    """One (tile_m, tile_n) output tile, accumulated over the K grid axis.

    x_ref: (tm, tk)   activations tile
    w_ref: (tn, tk)   weight tile in native nn.Linear layout (out, in)
    b_ref: (1, tn)    bias tile
    """
    k = pl.program_id(2)

    # Fold the bias into accumulator init: one broadcast per output tile.
    @pl.when(k == 0)
    def _():
        acc_ref[...] = jnp.broadcast_to(b_ref[...].astype(jnp.float32),
                                        acc_ref.shape)

    # x @ W^T with W kept in (N, K) layout: contract x dim 1 with w dim 1.
    # Runs in the input dtype (bf16 on real configs) with f32 accumulation on the MXU.
    acc_ref[...] += jax.lax.dot_general(
        x_ref[...], w_ref[...],
        dimension_numbers=(((1,), (1,)), ((), ())),
        preferred_element_type=jnp.float32)

    @pl.when(k == pl.num_programs(2) - 1)
    def _():
        o_ref[...] = acc_ref[...].astype(o_ref.dtype)


def _round_up(v, m):
    return (v + m - 1) // m * m


def _pad_to(a, shape):
    pads = [(0, s - d) for d, s in zip(a.shape, shape)]
    if all(p == (0, 0) for p in pads):
        return a
    return jnp.pad(a, pads)


@functools.partial(jax.jit, static_argnames=("tile_m", "tile_n", "tile_k"))
def _linear_2d(x2d, weight, bias, *, tile_m=256, tile_n=512, tile_k=512):
    """x2d: (T, K), weight: (N, K) nn.Linear layout, bias: (N,). Returns (T, N)."""
    T, K = x2d.shape
    N = weight.shape[0]

    # Effective tiles: full-dim blocks for small axes (valid per the (8,128) rule),
    # 8/128-aligned tiles otherwise.
    tm = min(tile_m, _round_up(T, 8))
    tn = N if N <= tile_n else tile_n
    tk = K if K <= tile_k else tile_k

    Tp, Kp, Np = _round_up(T, tm), _round_up(K, tk), _round_up(N, tn)

    xp = _pad_to(x2d, (Tp, Kp))
    wp = _pad_to(weight, (Np, Kp))
    bp = _pad_to(bias, (Np,)).reshape(1, Np)

    grid = (Tp // tm, Np // tn, Kp // tk)

    cost = pl.CostEstimate(
        flops=2 * Tp * Np * Kp,
        transcendentals=0,
        bytes_accessed=(xp.size * xp.dtype.itemsize
                        + wp.size * wp.dtype.itemsize
                        + bp.size * bp.dtype.itemsize
                        + Tp * Np * x2d.dtype.itemsize),
    )

    out = pl.pallas_call(
        _linear_kernel,
        out_shape=jax.ShapeDtypeStruct((Tp, Np), x2d.dtype),
        grid_spec=pltpu.PrefetchScalarGridSpec(
            num_scalar_prefetch=0,
            grid=grid,
            in_specs=[
                pl.BlockSpec((tm, tk), lambda i, j, k: (i, k)),   # x tile
                pl.BlockSpec((tn, tk), lambda i, j, k: (j, k)),   # W tile (streamed)
                pl.BlockSpec((1, tn), lambda i, j, k: (0, j)),    # bias tile
            ],
            out_specs=pl.BlockSpec((tm, tn), lambda i, j, k: (i, j)),
            scratch_shapes=[pltpu.VMEM((tm, tn), jnp.float32)],
        ),
        compiler_params=pltpu.CompilerParams(
            dimension_semantics=("parallel", "parallel", "arbitrary")),
        cost_estimate=cost,
    )(xp, wp, bp)

    return out[:T, :N]


def fake_quantize_weight(weight, bits=8):
    """Mirror of MemoryEfficientLinear._quantize_weights (plain-JAX weight prep)."""
    qmin, qmax = -(2 ** (bits - 1)), 2 ** (bits - 1) - 1
    wmin, wmax = weight.min(), weight.max()
    scale = (wmax - wmin) / (qmax - qmin)
    zero_point = qmin - wmin / scale
    q = jnp.clip(jnp.round(weight / scale + zero_point), qmin, qmax)
    return (q - zero_point) * scale


def memory_efficient_linear(x, weight, bias=None, *, sparse_mask=None,
                            quantize=False, bits=8,
                            tile_m=256, tile_n=512, tile_k=512):
    """Forward of MemoryEfficientLinear over arbitrary leading dims of x.

    weight: (out_features, in_features) as in nn.Linear.
    """
    if quantize:
        weight = fake_quantize_weight(weight, bits)
    if sparse_mask is not None:
        weight = weight * sparse_mask.astype(weight.dtype)
    # TODO(synk): update_pattern() (runtime re-sparsification via torch.quantile) and the
    # CUDA-only linear_relu_forward dispatch have no in-kernel equivalent; the hot path
    # (F.linear) is what the kernel implements.

    out_features, in_features = weight.shape
    lead = x.shape[:-1]
    x2d = x.reshape(-1, in_features)
    if bias is None:
        bias = jnp.zeros((out_features,), weight.dtype)

    y2d = _linear_2d(x2d, weight, bias,
                     tile_m=tile_m, tile_n=tile_n, tile_k=tile_k)
    return y2d.reshape(*lead, out_features)


def reference_linear(x, weight, bias):
    return jnp.einsum("...i,oi->...o", x, weight,
                      preferred_element_type=jnp.float32).astype(x.dtype) + bias


if __name__ == "__main__":
    # --- Small config consistent with the module: a (2, 8, 32) -> (2, 8, 64) linear ---
    batch, seq, in_features, out_features = 2, 8, 32, 64

    key = jax.random.PRNGKey(0)
    kx, kw = jax.random.split(key)

    x = jax.random.normal(kx, (batch, seq, in_features), dtype=jnp.float32)
    # MemoryEfficientLinear init: weight = randn(out, in) / sqrt(in); bias = zeros(out).
    weight = jax.random.normal(kw, (out_features, in_features),
                               dtype=jnp.float32) / math.sqrt(in_features)
    bias = jnp.zeros((out_features,), jnp.float32)

    out = memory_efficient_linear(x, weight, bias)
    out = jax.block_until_ready(out)

    ref = reference_linear(x, weight, bias)
    np.testing.assert_allclose(np.asarray(out), np.asarray(ref),
                               rtol=1e-5, atol=1e-5)

    # --- Second check: bf16, multi-tile grid (exercises the K-accumulator path) ---
    kx2, kw2 = jax.random.split(jax.random.PRNGKey(1))
    B2, S2, K2, N2 = 2, 192, 256, 384          # T=384 -> grid (3, 3, 2) with 128-tiles
    x2 = jax.random.normal(kx2, (B2, S2, K2), dtype=jnp.bfloat16)
    w2 = (jax.random.normal(kw2, (N2, K2), dtype=jnp.float32)
          / math.sqrt(K2)).astype(jnp.bfloat16)
    b2 = jnp.zeros((N2,), jnp.bfloat16)

    out2 = memory_efficient_linear(x2, w2, b2, tile_m=128, tile_n=128, tile_k=128)
    out2 = jax.block_until_ready(out2)
    ref2 = reference_linear(x2, w2, b2)
    np.testing.assert_allclose(np.asarray(out2, dtype=np.float32),
                               np.asarray(ref2, dtype=np.float32),
                               rtol=2e-2, atol=2e-2)

    print("KERNEL_OK")
</pallas_src>

<mosaic_0001>
module attributes {stable_mosaic.version = 11 : i64} {
  func.func @_linear_kernel(%arg0: i32, %arg1: i32, %arg2: i32, %arg3: memref<16x32xf32, #tpu.memory_space<vmem>>, %arg4: memref<64x32xf32, #tpu.memory_space<vmem>>, %arg5: memref<1x64xf32, #tpu.memory_space<vmem>>, %arg6: memref<16x64xf32, #tpu.memory_space<vmem>>, %arg7: memref<16x64xf32, #tpu.memory_space<vmem>>) attributes {dimension_semantics = [#tpu.dimension_semantics<parallel>, #tpu.dimension_semantics<parallel>, #tpu.dimension_semantics<arbitrary>], iteration_bounds = array<i64: 1, 1, 1>, scalar_prefetch = 0 : i64, scratch_operands = 1 : i64, tpu.core_type = #tpu.core_type<tc>, window_params = [{transform_indices = @transform_0, window_bounds = array<i64: 16, 32>}, {transform_indices = @transform_1, window_bounds = array<i64: 64, 32>}, {transform_indices = @transform_2, window_bounds = array<i64: 1, 64>}, {transform_indices = @transform_3, window_bounds = array<i64: 16, 64>}]} {
    %c0_i32 = arith.constant 0 : i32
    %0 = arith.cmpi eq, %arg2, %c0_i32 : i32
    %1 = arith.extui %0 : i1 to i32
    %c0_i32_0 = arith.constant 0 : i32
    %2 = arith.cmpi ne, %1, %c0_i32_0 : i32
    scf.if %2 {
      %c0_10 = arith.constant 0 : index
      %c0_11 = arith.constant 0 : index
      %12 = vector.load %arg5[%c0_10, %c0_11] : memref<1x64xf32, #tpu.memory_space<vmem>>, vector<1x64xf32>
      %13 = vector.shape_cast %12 : vector<1x64xf32> to vector<1x64xf32>
      %14 = vector.broadcast %13 : vector<1x64xf32> to vector<16x64xf32>
      %c0_12 = arith.constant 0 : index
      %c0_13 = arith.constant 0 : index
      %15 = vector.load %arg7[%c0_12, %c0_13] : memref<16x64xf32, #tpu.memory_space<vmem>>, vector<16x64xf32>
      tpu.vector_store %arg7[%c0_12, %c0_13], %14 {strides = array<i32>} : memref<16x64xf32, #tpu.memory_space<vmem>>, vector<16x64xf32>,
    } else {
    }
    %c0 = arith.constant 0 : index
    %c0_1 = arith.constant 0 : index
    %3 = vector.load %arg7[%c0, %c0_1] : memref<16x64xf32, #tpu.memory_space<vmem>>, vector<16x64xf32>
    %c0_2 = arith.constant 0 : index
    %c0_3 = arith.constant 0 : index
    %4 = vector.load %arg3[%c0_2, %c0_3] : memref<16x32xf32, #tpu.memory_space<vmem>>, vector<16x32xf32>
    %c0_4 = arith.constant 0 : index
    %c0_5 = arith.constant 0 : index
    %5 = vector.load %arg4[%c0_4, %c0_5] : memref<64x32xf32, #tpu.memory_space<vmem>>, vector<64x32xf32>
    %cst = arith.constant dense<0.000000e+00> : vector<16x64xf32>
    %6 = tpu.matmul %4, %5, %cst {dimension_numbers = #tpu.dot_dimension_numbers<[1], [1], [0], [0], [0, 0, 1, 0], [], []>} : vector<16x32xf32>, vector<64x32xf32>, vector<16x64xf32> -> vector<16x64xf32>
    %7 = arith.addf %3, %6 : vector<16x64xf32>
    %c0_6 = arith.constant 0 : index
    %c0_7 = arith.constant 0 : index
    %8 = vector.load %arg7[%c0_6, %c0_7] : memref<16x64xf32, #tpu.memory_space<vmem>>, vector<16x64xf32>
    tpu.vector_store %arg7[%c0_6, %c0_7], %7 {strides = array<i32>} : memref<16x64xf32, #tpu.memory_space<vmem>>, vector<16x64xf32>,
    %c0_i32_8 = arith.constant 0 : i32
    %9 = arith.cmpi eq, %arg2, %c0_i32_8 : i32
    %10 = arith.extui %9 : i1 to i32
    %c0_i32_9 = arith.constant 0 : i32
    %11 = arith.cmpi ne, %10, %c0_i32_9 : i32
    scf.if %11 {
      %c0_10 = arith.constant 0 : index
      %c0_11 = arith.constant 0 : index
      %12 = vector.load %arg7[%c0_10, %c0_11] : memref<16x64xf32, #tpu.memory_space<vmem>>, vector<16x64xf32>
      %c0_12 = arith.constant 0 : index
      %c0_13 = arith.constant 0 : index
      %13 = vector.load %arg6[%c0_12, %c0_13] : memref<16x64xf32, #tpu.memory_space<vmem>>, vector<16x64xf32>
      tpu.vector_store %arg6[%c0_12, %c0_13], %12 {strides = array<i32>} : memref<16x64xf32, #tpu.memory_space<vmem>>, vector<16x64xf32>,
    } else {
    }
    return
  }
  func.func @transform_0(%arg0: i32, %arg1: i32, %arg2: i32) -> (i32, i32) {
    %c0_i32 = arith.constant 0 : i32
    return %arg0, %arg2 : i32, i32
  }
  func.func @transform_1(%arg0: i32, %arg1: i32, %arg2: i32) -> (i32, i32) {
    %c0_i32 = arith.constant 0 : i32
    return %arg1, %arg2 : i32, i32
  }
  func.func @transform_2(%arg0: i32, %arg1: i32, %arg2: i32) -> (i32, i32) {
    %c0_i32 = arith.constant 0 : i32
    %c0_i32_0 = arith.constant 0 : i32
    return %c0_i32, %arg1 : i32, i32
  }
  func.func @transform_3(%arg0: i32, %arg1: i32, %arg2: i32) -> (i32, i32) {
    %c0_i32 = arith.constant 0 : i32
    return %arg0, %arg1 : i32, i32
  }
}

</mosaic_0001>

<llo_original>
// kernel: _linear_2d.1
$region0: #{_linear_2d.1}
  #allocation0 [shape = 'u32[]', space=smem, size = 0x4, offset = 0x4, fixed_abs, tag = 'smem constant byte address 0x4 - core index']
  #allocation1 [shape = 'u32[144,128]{1,0:T(1,128)}', space=vmem, size = 0x12000, scoped, tag = 'internal scratch']
  #allocation2 [shape = 'f32[16,64]{1,0:T(8,128)}', space=vmem, size = 0x2000, scoped, tag = 'scratch operand']
  %s0 = inlined_call_operand.vmem [shape: f32[16,32], index: 0, kind: input, shape index: {}]
  %s1 = inlined_call_operand.vmem [shape: f32[64,32], index: 1, kind: input, shape index: {}]
  %s2 = inlined_call_operand.vmem [shape: f32[1,64], index: 2, kind: input, shape index: {}]
  %s3 = inlined_call_operand.hbm [shape: f32[16,64], index: 3, kind: output, shape index: {}]
  %s4 = sld [smem:[#allocation0]]
  $region30: #{_linear_2d.1} parent=0
    _
  %s6 = ssub.s32 1, %s4
  %s7 = scalar_select 0, %s6, %s4
  $region1: #{_linear_2d.1} parent=0
    #allocation3 [shape = 'u8[8192]{0}', space=vmem, size = 0x2000, scoped, tag = 'output window, operand 0, single buffered']
    #allocation4 [shape = 's32[1]{0}', space=sflag, size = 0x4, scoped, tag = 'scoped memory for _linear_2d.1']
    %8 = vsyncpa [#allocation4], 0
    // Predicated region
    $region2: #{_linear_2d.1} parent=1 // pred_check
      _
    $region3: #{_linear_2d.1} parent=1 // pred_check_branch
      %10 = sbr.rel (0) target = $region5
    $region4: #{_linear_2d.1} parent=1 // pred_region
      _
    $region5: #{_linear_2d.1} parent=1 // pred_fallthru
      _
    // Predicated region
    $region6: #{_linear_2d.1} parent=1 // pred_check
      _
    $region7: #{_linear_2d.1} parent=1 // pred_check_branch
      %12 = sbr.rel (0) target = $region9
    $region8: #{_linear_2d.1} parent=1 // pred_region
      _
    $region9: #{_linear_2d.1} parent=1 // pred_fallthru
      _
    // Predicated region
    $region10: #{_linear_2d.1} parent=1 // pred_check
      _
    $region11: #{_linear_2d.1} parent=1 // pred_check_branch
      %14 = sbr.rel (0) target = $region13
    $region12: #{_linear_2d.1} parent=1 // pred_region
      _
    $region13: #{_linear_2d.1} parent=1 // pred_fallthru
      _
    %p15 = scmp.eq.s32.totalorder 0, 0
    // Predicated region
    $region14: #{_linear_2d.1} parent=1 // pred_check
      %p16 = pneg %p15
    $region15: #{_linear_2d.1} parent=1 // pred_check_branch
      %18 = sbr.rel (%p16) target = $region17
    $region16: #{_linear_2d.1} parent=1 // pred_region
      %v19 = vld [vmem:[%s2] sm:$0x1]
      %v21 = vlaneseq
      %v22 = vshrl.u32 %v21, 7
      %v23 = vsub.s32 0, %v22
      %v24 = vrot.slane %v19, %v23
      %vm26 = vcmask 523264
      %27 = vst.msk [vmem:[#allocation2] sm:$0xff] %vm26, %v24
      %28 = vst.msk [vmem:[#allocation2 + $0x8] sm:$0xff] %vm26, %v24
    $region17: #{_linear_2d.1} parent=1 // pred_fallthru
      _
    %v29 = vld [vmem:[#allocation2] sm:$0xff]
    %v30 = vld [vmem:[#allocation2 + $0x8] sm:$0xff]
    %v31 = vld [vmem:[%s0] sm:$0xff]
    %v32 = vld [vmem:[%s0 + $0x8] sm:$0xff]
    %v33 = vld [vmem:[%s1] sm:$0xff]
    %v34 = vld [vmem:[%s1 + $0x8] sm:$0xff]
    %v35 = vld [vmem:[%s1 + $0x10] sm:$0xff]
    %v36 = vld [vmem:[%s1 + $0x18] sm:$0xff]
    %v37 = vld [vmem:[%s1 + $0x20] sm:$0xff]
    %v38 = vld [vmem:[%s1 + $0x28] sm:$0xff]
    %v39 = vld [vmem:[%s1 + $0x30] sm:$0xff]
    %v40 = vld [vmem:[%s1 + $0x38] sm:$0xff]
    %vm41 = vcmask 261120
    %v43 = vsel %vm41, %v31, 0
    %v46 = vsel %vm41, %v32, 0
    %v49 = vsel %vm41, %v33, 0
    %v52 = vsel %vm41, %v34, 0
    %v55 = vsel %vm41, %v35, 0
    %v58 = vsel %vm41, %v36, 0
    %v61 = vsel %vm41, %v37, 0
    %v64 = vsel %vm41, %v38, 0
    %v67 = vsel %vm41, %v39, 0
    %v70 = vsel %vm41, %v40, 0
    %72 = vmatprep.subr.mxu0 0.0
    %73 = vmatpush1.xpose.msra.mxu0 0.0
    %74 = vmatprep.subr.mxu0 0.0
    %75 = vmatpush1.xpose.msra.mxu0 0.0
    %76 = vmatprep.subr.mxu0 0.0
    %77 = vmatpush1.xpose.msra.mxu0 0.0
    %78 = vmatprep.subr.mxu0 0.0
    %79 = vmatpush1.xpose.msra.mxu0 0.0
    %80 = vmatprep.subr.mxu0 0.0
    %81 = vmatpush1.xpose.msra.mxu0 0.0
    %82 = vmatprep.subr.mxu0 0.0
    %83 = vmatpush1.xpose.msra.mxu0 0.0
    %84 = vmatprep.subr.mxu0 0.0
    %85 = vmatpush1.xpose.msra.mxu0 0.0
    %86 = vmatprep.subr.mxu0 0.0
    %87 = vmatpush1.xpose.msra.mxu0 0.0
    %88 = vmatprep.subr.mxu0 0.0
    %89 = vmatpush1.xpose.msra.mxu0 %v70
    %90 = vmatprep.subr.mxu0 0.0
    %91 = vmatpush1.xpose.msra.mxu0 %v67
    %92 = vmatprep.subr.mxu0 0.0
    %93 = vmatpush1.xpose.msra.mxu0 %v64
    %94 = vmatprep.subr.mxu0 0.0
    %95 = vmatpush1.xpose.msra.mxu0 %v61
    %96 = vmatprep.subr.mxu0 0.0
    %97 = vmatpush1.xpose.msra.mxu0 %v58
    %98 = vmatprep.subr.mxu0 0.0
    %99 = vmatpush1.xpose.msra.mxu0 %v55
    %100 = vmatprep.subr.mxu0 0.0
    %101 = vmatpush1.xpose.msra.mxu0 %v52
    %102 = vmatprep.subr.mxu0 0.0
    %103 = vmatpush1.xpose.msra.mxu0 %v49
    %104 = vmatprep.subr.mxu0 0.0
    %105 = vmatpush2.xpose.msra.mxu0 0.0
    %106 = vmatprep.subr.mxu0 0.0
    %107 = vmatpush2.xpose.msra.mxu0 0.0
    %108 = vmatprep.subr.mxu0 0.0
    %109 = vmatpush2.xpose.msra.mxu0 0.0
    %110 = vmatprep.subr.mxu0 0.0
    %111 = vmatpush2.xpose.msra.mxu0 0.0
    %112 = vmatprep.subr.mxu0 0.0
    %113 = vmatpush2.xpose.msra.mxu0 0.0
    %114 = vmatprep.subr.mxu0 0.0
    %115 = vmatpush2.xpose.msra.mxu0 0.0
    %116 = vmatprep.subr.mxu0 0.0
    %117 = vmatpush2.xpose.msra.mxu0 0.0
    %118 = vmatprep.subr.mxu0 0.0
    %119 = vmatpush2.xpose.msra.mxu0 0.0
    %120 = vmatprep.subr.mxu0 0.0
    %121 = vmatpush2.xpose.msra.mxu0 0.0
    %122 = vmatprep.subr.mxu0 0.0
    %123 = vmatpush2.xpose.msra.mxu0 0.0
    %124 = vmatprep.subr.mxu0 0.0
    %125 = vmatpush2.xpose.msra.mxu0 0.0
    %126 = vmatprep.subr.mxu0 0.0
    %127 = vmatpush2.xpose.msra.mxu0 0.0
    %128 = vmatprep.subr.mxu0 0.0
    %129 = vmatpush2.xpose.msra.mxu0 0.0
    %130 = vmatprep.subr.mxu0 0.0
    %131 = vmatpush2.xpose.msra.mxu0 0.0
    %132 = vmatprep.subr.mxu0 0.0
    %133 = vmatpush2.xpose.msra.mxu0 0.0
    %134 = vmatprep.subr.mxu0 0.0
    %135 = vmatpush2.xpose.msra.mxu0 0.0
    %136 = vmatprep.mubr.f32.mxu0 0.0
    %137 = vmatmul.mubr.f32.gmra.mxu0 %v43
    %v138 = vpop.f32.mrf.mxu0
    %v139 = vadd.f32 0.0, %v138
    %v140 = vpop.f32.mrf.mxu0
    %141 = vmatprep.mubr.f32.mxu0 0.0
    %142 = vmatmul.mubr.f32.gmra.mxu0 %v46
    %v143 = vpop.f32.mrf.mxu0
    %v144 = vadd.f32 0.0, %v143
    %v145 = vpop.f32.mrf.mxu0
    %146 = vdwg.mxu0
    %v147 = vadd.f32 %v29, %v139
    %v148 = vadd.f32 %v30, %v144
    %vm149 = vcmask 523264
    %150 = vst.msk [vmem:[#allocation2] sm:$0xff] %vm149, %v147
    %151 = vst.msk [vmem:[#allocation2 + $0x8] sm:$0xff] %vm149, %v148
    // Predicated region
    $region18: #{_linear_2d.1} parent=1 // pred_check
      %p152 = pneg %p15
    $region19: #{_linear_2d.1} parent=1 // pred_check_branch
      %154 = sbr.rel (%p152) target = $region21
    $region20: #{_linear_2d.1} parent=1 // pred_region
      %v155 = vld [vmem:[#allocation2] sm:$0xff]
      %v156 = vld [vmem:[#allocation2 + $0x8] sm:$0xff]
      %157 = vst.msk [vmem:[#allocation3] sm:$0xff] %vm149, %v155
      %158 = vst.msk [vmem:[#allocation3 + $0x8] sm:$0xff] %vm149, %v156
    $region21: #{_linear_2d.1} parent=1 // pred_fallthru
      _
    // Predicated region
    $region22: #{_linear_2d.1} parent=1 // pred_check
      _
    $region23: #{_linear_2d.1} parent=1 // pred_check_branch
      %160 = sbr.rel (0) target = $region25
    $region24: #{_linear_2d.1} parent=1 // pred_region
      %s162 = ssub.s32 256, 256
      %163 = vsyncadd [#allocation4], %s162
      %s164 = sshll.u32 [#allocation3], 4
      %s165 = int_to_ptr.vmem [resolvable:$true] %s164
      %170 = dma.vmem_to_hbm [thread:$0]  %s165, 256, %s3, [#allocation4], 128, 128, 8
    $region25: #{_linear_2d.1} parent=1 // pred_fallthru
      _
    // Predicated region
    $region26: #{_linear_2d.1} parent=1 // pred_check
      _
    $region27: #{_linear_2d.1} parent=1 // pred_check_branch
      %172 = sbr.rel (0) target = $region29
    $region28: #{_linear_2d.1} parent=1 // pred_region
      %173 = dma.done [#allocation4], 256
    $region29: #{_linear_2d.1} parent=1 // pred_fallthru
      _
    %174 = vsyncpa [#allocation4], 1

</llo_original>
